<compile_context>
chip_gen: v6e
topology: v6e:2x2x1
jax: 0.10.0
libtpu: 0.0.40
codegen_flags: <defaults>
</compile_context>

<pallas_src>
import functools

import jax
import jax.numpy as jnp
import numpy as np
from jax.experimental import pallas as pl
from jax.experimental.pallas import tpu as pltpu


def _mm(a, b):
    # plain a @ b on the MXU, f32 accumulation, DEFAULT precision (bf16 passes)
    return jax.lax.dot_general(a, b, (((1,), (0,)), ((), ())),
                               preferred_element_type=jnp.float32)


def _choose_batch_tile(B, twoD):
    # ~1 MiB of input activations per grid step (well past the ~0.35 us/step
    # overhead knee measured on v6e), floor of 512 columns, 128-lane aligned.
    tb = max(512, (1024 * 1024) // (twoD * 4))
    tb = max(128, (tb // 128) * 128)
    # Keep >= 2 grid steps when the batch allows it so v7x's two TensorCores
    # can both take "parallel" work; harmless on single-TC v5e/v6e.
    if B >= 256:
        tb = min(tb, max(128, (B // 256) * 128))
    if tb >= B:
        return B
    return tb


def hamilton_v6_kernel(inp_ref, w1c_ref, w2c_ref, w2_ref, w2tn_ref, w1ts_ref,
                       b1c_ref, b2c_ref, out_ref, *, D):
    twoD = 2 * D

    # Natural (TB, 2D) tile -> feature-major (2D, TB): one XLU transpose, the
    # HBM DMA stays fully contiguous.  Rows [0, D) = x^T, [D, 2D) = v^T.
    ft = jnp.transpose(inp_ref[...])          # (2D, TB)
    xT = ft[:D, :]                            # (D, TB)
    vT = ft[D:, :]                            # (D, TB)

    # dx = v: store early (lane-dense region store, overlaps later compute).
    out_ref[:D, :] = vT

    W1c = w1c_ref[...]                        # (4D, D)  [W1 ; W11] stacked
    W2c = w2c_ref[...]                        # (2D, 4D) block-diag(W2, W22)
    W2 = w2_ref[...]                          # (D, 2D)  g.linear2
    W2Tn = w2tn_ref[...]                      # (2D, D)  W2^T, column 0 negated
    W1Ts = w1ts_ref[...]                      # (D, 2D)  -(W1^T), row 0 sign-flipped
    b1c = b1c_ref[...]                        # (4D, 1)  [b1 ; b11]
    b2c = b2c_ref[...]                        # (2D, 1)  [b2 ; b22]

    # ---- fused g.linear1 + augment_f.linear11 (shared RHS x^T) ----
    hc = _mm(W1c, xT) + b1c                   # (4D, TB)
    thc = jnp.tanh(hc)                        # (4D, TB)
    th_g = thc[:twoD, :]                      # (2D, TB) g-branch tanh

    # ---- fused g.linear2 + augment_f.linear22 (block-diagonal weight) ----
    zc = _mm(W2c, thc) + b2c                  # (2D, TB)
    z = zc[:D, :]                             # pre-sigmoid of g
    gq = zc[D:, :]                            # augment_f(x)

    sig = jax.nn.sigmoid(z)
    inv_s = pl.reciprocal(sig + 0.618, approx=True)   # 1/(sig+0.618), EUP slot
    sp = sig * (1.0 - sig)                    # sigmoid'
    dlt = 1.0 - th_g * th_g                   # tanh'   (2D, TB)

    # ---- connection terms (Jacobian never materialized; signs in weights) ----
    # vtemp1_j = -g_inv_j * sum_i v_i^2 * dg_i/dx_j
    s1 = _mm(W2Tn, vT * vT * sp)              # (2D, TB)
    vtemp1 = inv_s * _mm(W1Ts, dlt * s1)      # (D, TB)

    # vtemp2 = vtemp3 = v_j * g_inv_j * sum_i v_i * dg_j/dx_i
    w1v = _mm(W1c[:twoD, :], vT)              # W1 @ v   (2D, TB)
    t2 = _mm(W2, dlt * w1v)                   # (D, TB)
    vtemp2 = vT * inv_s * sp * t2             # (D, TB)

    # dv = vtemp1 + vtemp2 + vtemp3 + gq  (v⊗v symmetric -> vtemp3 == vtemp2)
    out_ref[D:, :] = vtemp1 + 2.0 * vtemp2 + gq


def hamilton_v6_forward(t, inp, params, *, batch_tile=None):
    """Hamilton_V6.forward: inp (B, 2D) -> (B, 2D) = hstack([dx, dv])."""
    del t  # the torch module ignores t as well
    inp = jnp.asarray(inp, jnp.float32)
    B, twoD = inp.shape
    D = twoD // 2
    if D % 8 != 0:
        # TODO(synk): pad the feature dim in the wrapper to support D % 8 != 0.
        raise ValueError(f"hamilton_v6_forward requires D % 8 == 0, got D={D}")

    if batch_tile is None:
        TB = _choose_batch_tile(B, twoD)
    else:
        TB = int(batch_tile)
        TB = B if TB >= B else max(128, (TB // 128) * 128)

    f32 = lambda a: jnp.asarray(a, jnp.float32)
    W1, b1 = f32(params["W1"]), f32(params["b1"])        # (2D, D), (2D,)
    W2, b2 = f32(params["W2"]), f32(params["b2"])        # (D, 2D), (D,)
    W11, b11 = f32(params["W11"]), f32(params["b11"])    # (2D, D), (2D,)
    W22, b22 = f32(params["W22"]), f32(params["b22"])    # (D, 2D), (D,)

    # Fold myLinear's "out[:, 0] *= -1" into the weights once (O(D^2), one-time).
    sign = jnp.ones((D,), jnp.float32).at[0].set(-1.0)
    W1c = jnp.concatenate([W1, W11], axis=0)                         # (4D, D)
    b1c = jnp.concatenate([b1, b11]).reshape(-1, 1)                  # (4D, 1)
    zpad = jnp.zeros((D, twoD), jnp.float32)
    W2c = jnp.block([[W2, zpad], [zpad, W22]])                       # (2D, 4D)
    b2c = jnp.concatenate([b2, b22]).reshape(-1, 1)                  # (2D, 1)
    W2Tn = W2.T * sign[None, :]                                      # (2D, D)
    W1Ts = -(W1.T) * sign[:, None]                                   # (D, 2D)

    wargs = (W1c, W2c, W2, W2Tn, W1Ts, b1c, b2c)

    in_specs = [pl.BlockSpec((TB, twoD), lambda i: (i, 0))] + [
        pl.BlockSpec(a.shape, lambda i: (0, 0)) for a in wargs]
    out_specs = pl.BlockSpec((twoD, TB), lambda i: (0, i))

    weight_bytes = 4 * int(sum(int(a.size) for a in wargs))
    tile_bytes = TB * twoD * 4
    # in/out double buffers + weights (x2) + generous headroom for the kernel's
    # feature-major f32 temporaries.
    vmem_est = 4 * tile_bytes + 2 * weight_bytes + 32 * D * TB * 4
    vmem_limit = int(min(max(vmem_est, 32 * 1024 * 1024), 64 * 1024 * 1024))

    cost = pl.CostEstimate(
        flops=int(B) * (40 * D * D + 64 * D),
        transcendentals=int(B) * (6 * D),
        bytes_accessed=int(2 * B * twoD * 4 + weight_bytes),
    )

    outT = pl.pallas_call(
        functools.partial(hamilton_v6_kernel, D=D),
        out_shape=jax.ShapeDtypeStruct((twoD, B), jnp.float32),
        grid=(pl.cdiv(B, TB),),
        in_specs=in_specs,
        out_specs=out_specs,
        compiler_params=pltpu.CompilerParams(
            dimension_semantics=("parallel",),
            vmem_limit_bytes=vmem_limit),
        cost_estimate=cost,
    )(inp, *wargs)

    # Output is kept feature-major / lane-dense; this final transpose is tiny
    # and a downstream consumer could instead take the (2D, B) slab directly.
    return outT.T


# -------- pure-JAX reference (mirrors the torch code, incl. autodiff jacobian) --------
def reference_forward(inp, params):
    D = inp.shape[-1] // 2
    x, v = inp[:, :D], inp[:, D:]

    def g_fn(xb):
        h = xb @ params["W1"].T + params["b1"]
        tt = jnp.tanh(h)
        z = tt @ params["W2"].T + params["b2"]
        out = jax.nn.sigmoid(z) + 0.618
        return out.at[..., 0].multiply(-1.0)

    g = g_fn(x)
    g_inv = 1.0 / g

    def g_single(xv):
        return g_fn(xv[None, :])[0]

    g_der = jax.vmap(jax.jacobian(g_single))(x)          # (B, D, D)
    c1 = -g_der * g_inv[:, None, :]
    c2 = g_der * g_inv[:, :, None]
    dvv = jnp.einsum("bi,bj->bij", v, v)
    diag = jnp.einsum("bii->bi", dvv)
    vt1 = jnp.sum(diag[:, :, None] * c1, axis=1)
    vt2 = jnp.einsum("hji,hji->hj", dvv, c2)
    vt3 = jnp.einsum("hij,hji->hj", dvv, c2)
    gq = jnp.tanh(x @ params["W11"].T + params["b11"]) @ params["W22"].T + params["b22"]
    dv = vt1 + vt2 + vt3 + gq
    return jnp.concatenate([v, dv], axis=-1)


if __name__ == "__main__":
    B, D = 8, 8                                   # batch=8, size_in=8 -> input (8, 16)
    key = jax.random.PRNGKey(0)
    keys = jax.random.split(key, 10)

    def lin_init(kw, kb, out_f, in_f):
        bound = 1.0 / np.sqrt(in_f)               # nn.Linear default init
        W = jax.random.uniform(kw, (out_f, in_f), jnp.float32, -bound, bound)
        b = jax.random.uniform(kb, (out_f,), jnp.float32, -bound, bound)
        return W, b

    W1, b1 = lin_init(keys[0], keys[1], 2 * D, D)       # g.linear1
    W2, b2 = lin_init(keys[2], keys[3], D, 2 * D)       # g.linear2
    W11, b11 = lin_init(keys[4], keys[5], 2 * D, D)     # augment_f.linear11
    W22, b22 = lin_init(keys[6], keys[7], D, 2 * D)     # augment_f.linear22
    u = jax.random.uniform(keys[8], (D,), jnp.float32, -0.001, 0.001)  # self.u: unused in forward

    params = dict(W1=W1, b1=b1, W2=W2, b2=b2, W11=W11, b11=b11, W22=W22, b22=b22)

    inp = 0.5 * jax.random.normal(keys[9], (B, 2 * D), jnp.float32)
    t = jnp.zeros(())                              # `t` argument is ignored by forward

    # Matmuls (kernel and reference) run at DEFAULT precision (single bf16 MXU
    # pass, f32 accumulation), so compare at bf16-level tolerance.
    out = jax.block_until_ready(hamilton_v6_forward(t, inp, params))
    ref = reference_forward(inp, params)
    np.testing.assert_allclose(np.asarray(out), np.asarray(ref), rtol=2e-2, atol=2e-2)

    # Second check: multi-step "parallel" grid with a ragged last tile
    # (grid = cdiv(300, 128) = 3; OOB rows masked by Pallas).
    B2 = 300
    inp2 = 0.5 * jax.random.normal(jax.random.PRNGKey(1), (B2, 2 * D), jnp.float32)
    out2 = jax.block_until_ready(hamilton_v6_forward(t, inp2, params, batch_tile=128))
    ref2 = reference_forward(inp2, params)
    np.testing.assert_allclose(np.asarray(out2), np.asarray(ref2), rtol=2e-2, atol=2e-2)

    print("KERNEL_OK")
</pallas_src>

<mosaic_0001>
module attributes {stable_mosaic.version = 11 : i64} {
  func.func @hamilton_v6_kernel(%arg0: i32, %arg1: memref<8x16xf32, #tpu.memory_space<vmem>>, %arg2: memref<32x8xf32, #tpu.memory_space<vmem>>, %arg3: memref<16x32xf32, #tpu.memory_space<vmem>>, %arg4: memref<8x16xf32, #tpu.memory_space<vmem>>, %arg5: memref<16x8xf32, #tpu.memory_space<vmem>>, %arg6: memref<8x16xf32, #tpu.memory_space<vmem>>, %arg7: memref<32x1xf32, #tpu.memory_space<vmem>>, %arg8: memref<16x1xf32, #tpu.memory_space<vmem>>, %arg9: memref<16x8xf32, #tpu.memory_space<vmem>>) attributes {dimension_semantics = [#tpu.dimension_semantics<parallel>], iteration_bounds = array<i64: 1>, scalar_prefetch = 0 : i64, scratch_operands = 0 : i64, tpu.core_type = #tpu.core_type<tc>, window_params = [{transform_indices = @transform_0, window_bounds = array<i64: 8, 16>}, {pipeline_mode = #tpu.pipeline_mode<synchronous>, transform_indices = @transform_1, window_bounds = array<i64: 32, 8>}, {pipeline_mode = #tpu.pipeline_mode<synchronous>, transform_indices = @transform_2, window_bounds = array<i64: 16, 32>}, {pipeline_mode = #tpu.pipeline_mode<synchronous>, transform_indices = @transform_3, window_bounds = array<i64: 8, 16>}, {pipeline_mode = #tpu.pipeline_mode<synchronous>, transform_indices = @transform_4, window_bounds = array<i64: 16, 8>}, {pipeline_mode = #tpu.pipeline_mode<synchronous>, transform_indices = @transform_5, window_bounds = array<i64: 8, 16>}, {pipeline_mode = #tpu.pipeline_mode<synchronous>, transform_indices = @transform_6, window_bounds = array<i64: 32, 1>}, {pipeline_mode = #tpu.pipeline_mode<synchronous>, transform_indices = @transform_7, window_bounds = array<i64: 16, 1>}, {transform_indices = @transform_8, window_bounds = array<i64: 16, 8>}]} {
    %c0 = arith.constant 0 : index
    %c0_0 = arith.constant 0 : index
    %0 = vector.load %arg1[%c0, %c0_0] : memref<8x16xf32, #tpu.memory_space<vmem>>, vector<8x16xf32>
    %1 = tpu.transpose %0, [1, 0] : vector<8x16xf32> -> vector<16x8xf32>
    %2 = vector.extract_strided_slice %1 {offsets = [0, 0], sizes = [8, 8], strides = [1, 1]} : vector<16x8xf32> to vector<8x8xf32>
    %3 = vector.extract_strided_slice %1 {offsets = [8, 0], sizes = [8, 8], strides = [1, 1]} : vector<16x8xf32> to vector<8x8xf32>
    %c0_1 = arith.constant 0 : index
    %c0_2 = arith.constant 0 : index
    %4 = vector.load %arg9[%c0_1, %c0_2] : memref<16x8xf32, #tpu.memory_space<vmem>>, vector<8x8xf32>
    tpu.vector_store %arg9[%c0_1, %c0_2], %3 {strides = array<i32>} : memref<16x8xf32, #tpu.memory_space<vmem>>, vector<8x8xf32>,
    %c0_3 = arith.constant 0 : index
    %c0_4 = arith.constant 0 : index
    %5 = vector.load %arg2[%c0_3, %c0_4] : memref<32x8xf32, #tpu.memory_space<vmem>>, vector<32x8xf32>
    %c0_5 = arith.constant 0 : index
    %c0_6 = arith.constant 0 : index
    %6 = vector.load %arg3[%c0_5, %c0_6] : memref<16x32xf32, #tpu.memory_space<vmem>>, vector<16x32xf32>
    %c0_7 = arith.constant 0 : index
    %c0_8 = arith.constant 0 : index
    %7 = vector.load %arg4[%c0_7, %c0_8] : memref<8x16xf32, #tpu.memory_space<vmem>>, vector<8x16xf32>
    %c0_9 = arith.constant 0 : index
    %c0_10 = arith.constant 0 : index
    %8 = vector.load %arg5[%c0_9, %c0_10] : memref<16x8xf32, #tpu.memory_space<vmem>>, vector<16x8xf32>
    %c0_11 = arith.constant 0 : index
    %c0_12 = arith.constant 0 : index
    %9 = vector.load %arg6[%c0_11, %c0_12] : memref<8x16xf32, #tpu.memory_space<vmem>>, vector<8x16xf32>
    %c0_13 = arith.constant 0 : index
    %c0_14 = arith.constant 0 : index
    %10 = vector.load %arg7[%c0_13, %c0_14] : memref<32x1xf32, #tpu.memory_space<vmem>>, vector<32x1xf32>
    %c0_15 = arith.constant 0 : index
    %c0_16 = arith.constant 0 : index
    %11 = vector.load %arg8[%c0_15, %c0_16] : memref<16x1xf32, #tpu.memory_space<vmem>>, vector<16x1xf32>
    %cst = arith.constant dense<0.000000e+00> : vector<32x8xf32>
    %12 = tpu.matmul %5, %2, %cst {dimension_numbers = #tpu.dot_dimension_numbers<[1], [0], [0], [1], [0, 0, 1, 1], [], []>} : vector<32x8xf32>, vector<8x8xf32>, vector<32x8xf32> -> vector<32x8xf32>
    %13 = vector.broadcast %10 : vector<32x1xf32> to vector<32x8xf32>
    %14 = arith.addf %12, %13 : vector<32x8xf32>
    %15 = math.tanh %14 : vector<32x8xf32>
    %16 = vector.extract_strided_slice %15 {offsets = [0, 0], sizes = [16, 8], strides = [1, 1]} : vector<32x8xf32> to vector<16x8xf32>
    %cst_17 = arith.constant dense<0.000000e+00> : vector<16x8xf32>
    %17 = tpu.matmul %6, %15, %cst_17 {dimension_numbers = #tpu.dot_dimension_numbers<[1], [0], [0], [1], [0, 0, 1, 1], [], []>} : vector<16x32xf32>, vector<32x8xf32>, vector<16x8xf32> -> vector<16x8xf32>
    %18 = vector.broadcast %11 : vector<16x1xf32> to vector<16x8xf32>
    %19 = arith.addf %17, %18 : vector<16x8xf32>
    %20 = vector.extract_strided_slice %19 {offsets = [0, 0], sizes = [8, 8], strides = [1, 1]} : vector<16x8xf32> to vector<8x8xf32>
    %21 = vector.extract_strided_slice %19 {offsets = [8, 0], sizes = [8, 8], strides = [1, 1]} : vector<16x8xf32> to vector<8x8xf32>
    %22 = arith.negf %20 : vector<8x8xf32>
    %23 = math.exp %22 : vector<8x8xf32>
    %cst_18 = arith.constant 1.000000e+00 : f32
    %24 = vector.broadcast %cst_18 : f32 to vector<8x8xf32>
    %25 = arith.addf %24, %23 : vector<8x8xf32>
    %26 = arith.divf %24, %25 : vector<8x8xf32>
    %cst_19 = arith.constant 0.61799997 : f32
    %27 = vector.broadcast %cst_19 : f32 to vector<8x8xf32>
    %28 = arith.addf %26, %27 : vector<8x8xf32>
    %29 = tpu.reciprocal %28 {approx = true} : vector<8x8xf32> -> vector<8x8xf32>
    %cst_20 = arith.constant 1.000000e+00 : f32
    %30 = vector.broadcast %cst_20 : f32 to vector<8x8xf32>
    %31 = arith.subf %30, %26 : vector<8x8xf32>
    %32 = arith.mulf %26, %31 : vector<8x8xf32>
    %33 = arith.mulf %16, %16 : vector<16x8xf32>
    %cst_21 = arith.constant 1.000000e+00 : f32
    %34 = vector.broadcast %cst_21 : f32 to vector<16x8xf32>
    %35 = arith.subf %34, %33 : vector<16x8xf32>
    %36 = arith.mulf %3, %3 : vector<8x8xf32>
    %37 = arith.mulf %36, %32 : vector<8x8xf32>
    %cst_22 = arith.constant dense<0.000000e+00> : vector<16x8xf32>
    %38 = tpu.matmul %8, %37, %cst_22 {dimension_numbers = #tpu.dot_dimension_numbers<[1], [0], [0], [1], [0, 0, 1, 1], [], []>} : vector<16x8xf32>, vector<8x8xf32>, vector<16x8xf32> -> vector<16x8xf32>
    %39 = arith.mulf %35, %38 : vector<16x8xf32>
    %cst_23 = arith.constant dense<0.000000e+00> : vector<8x8xf32>
    %40 = tpu.matmul %9, %39, %cst_23 {dimension_numbers = #tpu.dot_dimension_numbers<[1], [0], [0], [1], [0, 0, 1, 1], [], []>} : vector<8x16xf32>, vector<16x8xf32>, vector<8x8xf32> -> vector<8x8xf32>
    %41 = arith.mulf %29, %40 : vector<8x8xf32>
    %42 = vector.extract_strided_slice %5 {offsets = [0, 0], sizes = [16, 8], strides = [1, 1]} : vector<32x8xf32> to vector<16x8xf32>
    %cst_24 = arith.constant dense<0.000000e+00> : vector<16x8xf32>
    %43 = tpu.matmul %42, %3, %cst_24 {dimension_numbers = #tpu.dot_dimension_numbers<[1], [0], [0], [1], [0, 0, 1, 1], [], []>} : vector<16x8xf32>, vector<8x8xf32>, vector<16x8xf32> -> vector<16x8xf32>
    %44 = arith.mulf %35, %43 : vector<16x8xf32>
    %cst_25 = arith.constant dense<0.000000e+00> : vector<8x8xf32>
    %45 = tpu.matmul %7, %44, %cst_25 {dimension_numbers = #tpu.dot_dimension_numbers<[1], [0], [0], [1], [0, 0, 1, 1], [], []>} : vector<8x16xf32>, vector<16x8xf32>, vector<8x8xf32> -> vector<8x8xf32>
    %46 = arith.mulf %3, %29 : vector<8x8xf32>
    %47 = arith.mulf %46, %32 : vector<8x8xf32>
    %48 = arith.mulf %47, %45 : vector<8x8xf32>
    %cst_26 = arith.constant 2.000000e+00 : f32
    %49 = vector.broadcast %cst_26 : f32 to vector<8x8xf32>
    %50 = arith.mulf %49, %48 : vector<8x8xf32>
    %51 = arith.addf %41, %50 : vector<8x8xf32>
    %52 = arith.addf %51, %21 : vector<8x8xf32>
    %c8 = arith.constant 8 : index
    %c0_27 = arith.constant 0 : index
    %53 = vector.load %arg9[%c8, %c0_27] : memref<16x8xf32, #tpu.memory_space<vmem>>, vector<8x8xf32>
    tpu.vector_store %arg9[%c8, %c0_27], %52 {strides = array<i32>} : memref<16x8xf32, #tpu.memory_space<vmem>>, vector<8x8xf32>,
    return
  }
  func.func @transform_0(%arg0: i32) -> (i32, i32) {
    %c0_i32 = arith.constant 0 : i32
    %c0_i32_0 = arith.constant 0 : i32
    return %arg0, %c0_i32 : i32, i32
  }
  func.func @transform_1(%arg0: i32) -> (i32, i32) {
    %c0_i32 = arith.constant 0 : i32
    %c0_i32_0 = arith.constant 0 : i32
    %c0_i32_1 = arith.constant 0 : i32
    return %c0_i32, %c0_i32_0 : i32, i32
  }
  func.func @transform_2(%arg0: i32) -> (i32, i32) {
    %c0_i32 = arith.constant 0 : i32
    %c0_i32_0 = arith.constant 0 : i32
    %c0_i32_1 = arith.constant 0 : i32
    return %c0_i32, %c0_i32_0 : i32, i32
  }
  func.func @transform_3(%arg0: i32) -> (i32, i32) {
    %c0_i32 = arith.constant 0 : i32
    %c0_i32_0 = arith.constant 0 : i32
    %c0_i32_1 = arith.constant 0 : i32
    return %c0_i32, %c0_i32_0 : i32, i32
  }
  func.func @transform_4(%arg0: i32) -> (i32, i32) {
    %c0_i32 = arith.constant 0 : i32
    %c0_i32_0 = arith.constant 0 : i32
    %c0_i32_1 = arith.constant 0 : i32
    return %c0_i32, %c0_i32_0 : i32, i32
  }
  func.func @transform_5(%arg0: i32) -> (i32, i32) {
    %c0_i32 = arith.constant 0 : i32
    %c0_i32_0 = arith.constant 0 : i32
    %c0_i32_1 = arith.constant 0 : i32
    return %c0_i32, %c0_i32_0 : i32, i32
  }
  func.func @transform_6(%arg0: i32) -> (i32, i32) {
    %c0_i32 = arith.constant 0 : i32
    %c0_i32_0 = arith.constant 0 : i32
    %c0_i32_1 = arith.constant 0 : i32
    return %c0_i32, %c0_i32_0 : i32, i32
  }
  func.func @transform_7(%arg0: i32) -> (i32, i32) {
    %c0_i32 = arith.constant 0 : i32
    %c0_i32_0 = arith.constant 0 : i32
    %c0_i32_1 = arith.constant 0 : i32
    return %c0_i32, %c0_i32_0 : i32, i32
  }
  func.func @transform_8(%arg0: i32) -> (i32, i32) {
    %c0_i32 = arith.constant 0 : i32
    %c0_i32_0 = arith.constant 0 : i32
    return %c0_i32, %arg0 : i32, i32
  }
}

</mosaic_0001>

<llo_original>
// kernel: tpu_custom_call.1
$region0: #{tpu_custom_call.1}
  #allocation0 [shape = 'u32[]', space=smem, size = 0x4, offset = 0x4, fixed_abs, tag = 'smem constant byte address 0x4 - core index']
  #allocation1 [shape = 'u32[144,128]{1,0:T(1,128)}', space=vmem, size = 0x12000, scoped, tag = 'internal scratch']
  %s0 = inlined_call_operand.vmem [shape: f32[8,16], index: 0, kind: input, shape index: {}]
  %s1 = inlined_call_operand.vmem [shape: f32[32,8], index: 1, kind: input, shape index: {}]
  %s2 = inlined_call_operand.vmem [shape: f32[16,32], index: 2, kind: input, shape index: {}]
  %s3 = inlined_call_operand.vmem [shape: f32[8,16], index: 3, kind: input, shape index: {}]
  %s4 = inlined_call_operand.vmem [shape: f32[16,8], index: 4, kind: input, shape index: {}]
  %s5 = inlined_call_operand.vmem [shape: f32[8,16], index: 5, kind: input, shape index: {}]
  %s6 = inlined_call_operand.vmem [shape: f32[32,1], index: 6, kind: input, shape index: {}]
  %s7 = inlined_call_operand.vmem [shape: f32[16,1], index: 7, kind: input, shape index: {}]
  %s8 = inlined_call_operand.vmem [shape: f32[16,8], index: 8, kind: output, shape index: {}]
  %s9 = sld [smem:[#allocation0]]
  $region42: #{tpu_custom_call.1} parent=0
    _
  %s11 = ssub.s32 1, %s9
  %s12 = scalar_select 0, %s11, %s9
  // Predicated region
  $region2: #{tpu_custom_call.1} parent=0 // pred_check
    _
  $region3: #{tpu_custom_call.1} parent=0 // pred_check_branch
    %14 = sbr.rel (0) target = $region5
  $region4: #{tpu_custom_call.1} parent=0 // pred_region
    _
  $region5: #{tpu_custom_call.1} parent=0 // pred_fallthru
    _
  // Predicated region
  $region6: #{tpu_custom_call.1} parent=0 // pred_check
    _
  $region7: #{tpu_custom_call.1} parent=0 // pred_check_branch
    %16 = sbr.rel (0) target = $region9
  $region8: #{tpu_custom_call.1} parent=0 // pred_region
    _
  $region9: #{tpu_custom_call.1} parent=0 // pred_fallthru
    _
  // Predicated region
  $region10: #{tpu_custom_call.1} parent=0 // pred_check
    _
  $region11: #{tpu_custom_call.1} parent=0 // pred_check_branch
    %18 = sbr.rel (0) target = $region13
  $region12: #{tpu_custom_call.1} parent=0 // pred_region
    _
  $region13: #{tpu_custom_call.1} parent=0 // pred_fallthru
    _
  // Predicated region
  $region14: #{tpu_custom_call.1} parent=0 // pred_check
    _
  $region15: #{tpu_custom_call.1} parent=0 // pred_check_branch
    %20 = sbr.rel (0) target = $region17
  $region16: #{tpu_custom_call.1} parent=0 // pred_region
    _
  $region17: #{tpu_custom_call.1} parent=0 // pred_fallthru
    _
  // Predicated region
  $region18: #{tpu_custom_call.1} parent=0 // pred_check
    _
  $region19: #{tpu_custom_call.1} parent=0 // pred_check_branch
    %22 = sbr.rel (0) target = $region21
  $region20: #{tpu_custom_call.1} parent=0 // pred_region
    _
  $region21: #{tpu_custom_call.1} parent=0 // pred_fallthru
    _
  // Predicated region
  $region22: #{tpu_custom_call.1} parent=0 // pred_check
    _
  $region23: #{tpu_custom_call.1} parent=0 // pred_check_branch
    %24 = sbr.rel (0) target = $region25
  $region24: #{tpu_custom_call.1} parent=0 // pred_region
    _
  $region25: #{tpu_custom_call.1} parent=0 // pred_fallthru
    _
  // Predicated region
  $region26: #{tpu_custom_call.1} parent=0 // pred_check
    _
  $region27: #{tpu_custom_call.1} parent=0 // pred_check_branch
    %26 = sbr.rel (0) target = $region29
  $region28: #{tpu_custom_call.1} parent=0 // pred_region
    _
  $region29: #{tpu_custom_call.1} parent=0 // pred_fallthru
    _
  // Predicated region
  $region30: #{tpu_custom_call.1} parent=0 // pred_check
    _
  $region31: #{tpu_custom_call.1} parent=0 // pred_check_branch
    %28 = sbr.rel (0) target = $region33
  $region32: #{tpu_custom_call.1} parent=0 // pred_region
    _
  $region33: #{tpu_custom_call.1} parent=0 // pred_fallthru
    _
  %v29 = vld [vmem:[%s0] sm:$0xff]
  %30 = vxpose.xlu0.b32.start [1/16] %v29, 128
  %31 = vxpose.xlu0.b32.cont [2/16] 0.0, 128
  %32 = vxpose.xlu0.b32.cont [3/16] 0.0, 128
  %33 = vxpose.xlu0.b32.cont [4/16] 0.0, 128
  %34 = vxpose.xlu0.b32.cont [5/16] 0.0, 128
  %35 = vxpose.xlu0.b32.cont [6/16] 0.0, 128
  %36 = vxpose.xlu0.b32.cont [7/16] 0.0, 128
  %37 = vxpose.xlu0.b32.cont [8/16] 0.0, 128
  %38 = vxpose.xlu0.b32.cont [9/16] 0.0, 128
  %39 = vxpose.xlu0.b32.cont [10/16] 0.0, 128
  %40 = vxpose.xlu0.b32.cont [11/16] 0.0, 128
  %41 = vxpose.xlu0.b32.cont [12/16] 0.0, 128
  %42 = vxpose.xlu0.b32.cont [13/16] 0.0, 128
  %43 = vxpose.xlu0.b32.cont [14/16] 0.0, 128
  %44 = vxpose.xlu0.b32.cont [15/16] 0.0, 128
  %45 = vxpose.xlu0.b32.end [16/16] 0.0, 128
  %v46 = vpop.trf.xlu0
  %v47 = vpop.trf.xlu0
  %v48 = vpop.trf.xlu0
  %v49 = vpop.trf.xlu0
  %v50 = vpop.trf.xlu0
  %v51 = vpop.trf.xlu0
  %v52 = vpop.trf.xlu0
  %v53 = vpop.trf.xlu0
  %v54 = vpop.trf.xlu0
  %v55 = vpop.trf.xlu0
  %v56 = vpop.trf.xlu0
  %v57 = vpop.trf.xlu0
  %v58 = vpop.trf.xlu0
  %v59 = vpop.trf.xlu0
  %v60 = vpop.trf.xlu0
  %v61 = vpop.trf.xlu0
  %vm62 = vcmask 64512
  %63 = vst.msk [vmem:[%s8] sm:$0xff] %vm62, %v47
  %v64 = vld [vmem:[%s1] sm:$0xff]
  %v65 = vld [vmem:[%s1 + $0x8] sm:$0xff]
  %v66 = vld [vmem:[%s1 + $0x10] sm:$0xff]
  %v67 = vld [vmem:[%s1 + $0x18] sm:$0xff]
  %v68 = vld [vmem:[%s2] sm:$0xff]
  %v69 = vld [vmem:[%s2 + $0x8] sm:$0xff]
  %v70 = vld [vmem:[%s3] sm:$0xff]
  %v71 = vld [vmem:[%s4] sm:$0xff]
  %v72 = vld [vmem:[%s4 + $0x8] sm:$0xff]
  %v73 = vld [vmem:[%s5] sm:$0xff]
  %v74 = vld [vmem:[%s6] sm:$0xff]
  %v75 = vld [vmem:[%s6 + $0x8] sm:$0xff]
  %v76 = vld [vmem:[%s6 + $0x10] sm:$0xff]
  %v77 = vld [vmem:[%s6 + $0x18] sm:$0xff]
  %v78 = vld [vmem:[%s7] sm:$0xff]
  %v79 = vld [vmem:[%s7 + $0x8] sm:$0xff]
  %81 = vset.pattern.permute.xlu0 0
  %82 = vperm.xlu0 %81, %v74
  %v83 = vpop.permute.xlu0 %82
  %86 = vset.pattern.permute.xlu0 0
  %87 = vperm.xlu0 %86, %v75
  %v88 = vpop.permute.xlu0 %87
  %91 = vset.pattern.permute.xlu0 0
  %92 = vperm.xlu0 %91, %v76
  %v93 = vpop.permute.xlu0 %92
  %96 = vset.pattern.permute.xlu0 0
  %97 = vperm.xlu0 %96, %v77
  %v98 = vpop.permute.xlu0 %97
  %v101 = vsel %vm62, %v64, 0
  %v104 = vsel %vm62, %v65, 0
  %v107 = vsel %vm62, %v66, 0
  %v110 = vsel %vm62, %v67, 0
  %112 = vmatprep.subr.mxu0 0.0
  %113 = vmatpush1.msra.mxu0 0.0
  %114 = vmatprep.subr.mxu0 0.0
  %115 = vmatpush1.msra.mxu0 0.0
  %116 = vmatprep.subr.mxu0 0.0
  %117 = vmatpush1.msra.mxu0 0.0
  %118 = vmatprep.subr.mxu0 0.0
  %119 = vmatpush1.msra.mxu0 0.0
  %120 = vmatprep.subr.mxu0 0.0
  %121 = vmatpush1.msra.mxu0 0.0
  %122 = vmatprep.subr.mxu0 0.0
  %123 = vmatpush1.msra.mxu0 0.0
  %124 = vmatprep.subr.mxu0 0.0
  %125 = vmatpush1.msra.mxu0 0.0
  %126 = vmatprep.subr.mxu0 0.0
  %127 = vmatpush1.msra.mxu0 0.0
  %128 = vmatprep.subr.mxu0 0.0
  %129 = vmatpush1.msra.mxu0 0.0
  %130 = vmatprep.subr.mxu0 0.0
  %131 = vmatpush1.msra.mxu0 0.0
  %132 = vmatprep.subr.mxu0 0.0
  %133 = vmatpush1.msra.mxu0 0.0
  %134 = vmatprep.subr.mxu0 0.0
  %135 = vmatpush1.msra.mxu0 0.0
  %136 = vmatprep.subr.mxu0 0.0
  %137 = vmatpush1.msra.mxu0 0.0
  %138 = vmatprep.subr.mxu0 0.0
  %139 = vmatpush1.msra.mxu0 0.0
  %140 = vmatprep.subr.mxu0 0.0
  %141 = vmatpush1.msra.mxu0 0.0
  %142 = vmatprep.subr.mxu0 0.0
  %143 = vmatpush1.msra.mxu0 %v46
  %144 = vmatprep.subr.mxu0 0.0
  %145 = vmatpush2.msra.mxu0 0.0
  %146 = vmatprep.subr.mxu0 0.0
  %147 = vmatpush2.msra.mxu0 0.0
  %148 = vmatprep.subr.mxu0 0.0
  %149 = vmatpush2.msra.mxu0 0.0
  %150 = vmatprep.subr.mxu0 0.0
  %151 = vmatpush2.msra.mxu0 0.0
  %152 = vmatprep.subr.mxu0 0.0
  %153 = vmatpush2.msra.mxu0 0.0
  %154 = vmatprep.subr.mxu0 0.0
  %155 = vmatpush2.msra.mxu0 0.0
  %156 = vmatprep.subr.mxu0 0.0
  %157 = vmatpush2.msra.mxu0 0.0
  %158 = vmatprep.subr.mxu0 0.0
  %159 = vmatpush2.msra.mxu0 0.0
  %160 = vmatprep.subr.mxu0 0.0
  %161 = vmatpush2.msra.mxu0 0.0
  %162 = vmatprep.subr.mxu0 0.0
  %163 = vmatpush2.msra.mxu0 0.0
  %164 = vmatprep.subr.mxu0 0.0
  %165 = vmatpush2.msra.mxu0 0.0
  %166 = vmatprep.subr.mxu0 0.0
  %167 = vmatpush2.msra.mxu0 0.0
  %168 = vmatprep.subr.mxu0 0.0
  %169 = vmatpush2.msra.mxu0 0.0
  %170 = vmatprep.subr.mxu0 0.0
  %171 = vmatpush2.msra.mxu0 0.0
  %172 = vmatprep.subr.mxu0 0.0
  %173 = vmatpush2.msra.mxu0 0.0
  %174 = vmatprep.subr.mxu0 0.0
  %175 = vmatpush2.msra.mxu0 0.0
  %176 = vmatprep.mubr.f32.mxu0 0.0
  %177 = vmatmul.mubr.f32.gmra.mxu0 %v101
  %v178 = vpop.f32.mrf.mxu0
  %v179 = vadd.f32 %v83, %v178
  %v180 = vpop.f32.mrf.mxu0
  %181 = vmatprep.mubr.f32.mxu0 0.0
  %182 = vmatmul.mubr.f32.gmra.mxu0 %v104
  %v183 = vpop.f32.mrf.mxu0
  %v184 = vadd.f32 %v88, %v183
  %v185 = vpop.f32.mrf.mxu0
  %186 = vmatprep.mubr.f32.mxu0 0.0
  %187 = vmatmul.mubr.f32.gmra.mxu0 %v107
  %v188 = vpop.f32.mrf.mxu0
  %v189 = vadd.f32 %v93, %v188
  %v190 = vpop.f32.mrf.mxu0
  %191 = vmatprep.mubr.f32.mxu0 0.0
  %192 = vmatmul.mubr.f32.gmra.mxu0 %v110
  %v193 = vpop.f32.mrf.mxu0
  %v194 = vadd.f32 %v98, %v193
  %v195 = vpop.f32.mrf.mxu0
  %196 = vdwg.mxu0
  %v197 = vtanh.pop %v179
  %v198 = vtanh.pop %v184
  %v199 = vtanh.pop %v189
  %v200 = vtanh.pop %v194
  %202 = vset.pattern.permute.xlu0 0
  %203 = vperm.xlu0 %202, %v78
  %v204 = vpop.permute.xlu0 %203
  %207 = vset.pattern.permute.xlu0 0
  %208 = vperm.xlu0 %207, %v79
  %v209 = vpop.permute.xlu0 %208
  %vm211 = vcmask 261120
  %v213 = vsel %vm211, %v68, 0
  %v216 = vsel %vm211, %v69, 0
  %218 = vmatprep.subr.mxu0 0.0
  %219 = vmatpush1.msra.mxu0 0.0
  %220 = vmatprep.subr.mxu0 0.0
  %221 = vmatpush1.msra.mxu0 0.0
  %222 = vmatprep.subr.mxu0 0.0
  %223 = vmatpush1.msra.mxu0 0.0
  %224 = vmatprep.subr.mxu0 0.0
  %225 = vmatpush1.msra.mxu0 0.0
  %226 = vmatprep.subr.mxu0 0.0
  %227 = vmatpush1.msra.mxu0 0.0
  %228 = vmatprep.subr.mxu0 0.0
  %229 = vmatpush1.msra.mxu0 0.0
  %230 = vmatprep.subr.mxu0 0.0
  %231 = vmatpush1.msra.mxu0 0.0
  %232 = vmatprep.subr.mxu0 0.0
  %233 = vmatpush1.msra.mxu0 0.0
  %234 = vmatprep.subr.mxu0 0.0
  %235 = vmatpush1.msra.mxu0 0.0
  %236 = vmatprep.subr.mxu0 0.0
  %237 = vmatpush1.msra.mxu0 0.0
  %238 = vmatprep.subr.mxu0 0.0
  %239 = vmatpush1.msra.mxu0 0.0
  %240 = vmatprep.subr.mxu0 0.0
  %241 = vmatpush1.msra.mxu0 0.0
  %242 = vmatprep.subr.mxu0 0.0
  %243 = vmatpush1.msra.mxu0 %v200
  %244 = vmatprep.subr.mxu0 0.0
  %245 = vmatpush1.msra.mxu0 %v199
  %246 = vmatprep.subr.mxu0 0.0
  %247 = vmatpush1.msra.mxu0 %v198
  %248 = vmatprep.subr.mxu0 0.0
  %249 = vmatpush1.msra.mxu0 %v197
  %250 = vmatprep.subr.mxu0 0.0
  %251 = vmatpush2.msra.mxu0 0.0
  %252 = vmatprep.subr.mxu0 0.0
  %253 = vmatpush2.msra.mxu0 0.0
  %254 = vmatprep.subr.mxu0 0.0
  %255 = vmatpush2.msra.mxu0 0.0
  %256 = vmatprep.subr.mxu0 0.0
  %257 = vmatpush2.msra.mxu0 0.0
  %258 = vmatprep.subr.mxu0 0.0
  %259 = vmatpush2.msra.mxu0 0.0
  %260 = vmatprep.subr.mxu0 0.0
  %261 = vmatpush2.msra.mxu0 0.0
  %262 = vmatprep.subr.mxu0 0.0
  %263 = vmatpush2.msra.mxu0 0.0
  %264 = vmatprep.subr.mxu0 0.0
  %265 = vmatpush2.msra.mxu0 0.0
  %266 = vmatprep.subr.mxu0 0.0
  %267 = vmatpush2.msra.mxu0 0.0
  %268 = vmatprep.subr.mxu0 0.0
  %269 = vmatpush2.msra.mxu0 0.0
  %270 = vmatprep.subr.mxu0 0.0
  %271 = vmatpush2.msra.mxu0 0.0
  %272 = vmatprep.subr.mxu0 0.0
  %273 = vmatpush2.msra.mxu0 0.0
  %274 = vmatprep.subr.mxu0 0.0
  %275 = vmatpush2.msra.mxu0 0.0
  %276 = vmatprep.subr.mxu0 0.0
  %277 = vmatpush2.msra.mxu0 0.0
  %278 = vmatprep.subr.mxu0 0.0
  %279 = vmatpush2.msra.mxu0 0.0
  %280 = vmatprep.subr.mxu0 0.0
  %281 = vmatpush2.msra.mxu0 0.0
  %282 = vmatprep.mubr.f32.mxu0 0.0
  %283 = vmatmul.mubr.f32.gmra.mxu0 %v213
  %v284 = vpop.f32.mrf.mxu0
  %v285 = vadd.f32 %v204, %v284
  %v286 = vpop.f32.mrf.mxu0
  %287 = vmatprep.mubr.f32.mxu0 0.0
  %288 = vmatmul.mubr.f32.gmra.mxu0 %v216
  %v289 = vpop.f32.mrf.mxu0
  %v290 = vadd.f32 %v209, %v289
  %v291 = vpop.f32.mrf.mxu0
  %292 = vdwg.mxu0
  %v293 = vxor.u32 %v285, 2147483648
  %v294 = vmul.f32 %v293, 1.442695
  %v295 = vpow.pop %v294
  %v296 = vadd.f32 %v295, 1.0
  %v297 = vrcp.pop %v296
  %v298 = vmul.f32 1.0, %v297
  %v299 = vadd.f32 %v298, 0.618
  %v300 = vrcp.pop %v299
  %v301 = vsub.f32 1.0, %v298
  %v302 = vmul.f32 %v298, %v301
  %v303 = vmul.f32 %v197, %v197
  %v304 = vmul.f32 %v198, %v198
  %v305 = vsub.f32 1.0, %v303
  %v306 = vsub.f32 1.0, %v304
  %v307 = vmul.f32 %v47, %v47
  %v308 = vmul.f32 %v307, %v302
  %v310 = vsel %vm62, %v71, 0
  %v313 = vsel %vm62, %v72, 0
  %315 = vmatprep.subr.mxu0 0.0
  %316 = vmatpush1.msra.mxu0 0.0
  %317 = vmatprep.subr.mxu0 0.0
  %318 = vmatpush1.msra.mxu0 0.0
  %319 = vmatprep.subr.mxu0 0.0
  %320 = vmatpush1.msra.mxu0 0.0
  %321 = vmatprep.subr.mxu0 0.0
  %322 = vmatpush1.msra.mxu0 0.0
  %323 = vmatprep.subr.mxu0 0.0
  %324 = vmatpush1.msra.mxu0 0.0
  %325 = vmatprep.subr.mxu0 0.0
  %326 = vmatpush1.msra.mxu0 0.0
  %327 = vmatprep.subr.mxu0 0.0
  %328 = vmatpush1.msra.mxu0 0.0
  %329 = vmatprep.subr.mxu0 0.0
  %330 = vmatpush1.msra.mxu0 0.0
  %331 = vmatprep.subr.mxu0 0.0
  %332 = vmatpush1.msra.mxu0 0.0
  %333 = vmatprep.subr.mxu0 0.0
  %334 = vmatpush1.msra.mxu0 0.0
  %335 = vmatprep.subr.mxu0 0.0
  %336 = vmatpush1.msra.mxu0 0.0
  %337 = vmatprep.subr.mxu0 0.0
  %338 = vmatpush1.msra.mxu0 0.0
  %339 = vmatprep.subr.mxu0 0.0
  %340 = vmatpush1.msra.mxu0 0.0
  %341 = vmatprep.subr.mxu0 0.0
  %342 = vmatpush1.msra.mxu0 0.0
  %343 = vmatprep.subr.mxu0 0.0
  %344 = vmatpush1.msra.mxu0 0.0
  %345 = vmatprep.subr.mxu0 0.0
  %346 = vmatpush1.msra.mxu0 %v308
  %347 = vmatprep.subr.mxu0 0.0
  %348 = vmatpush2.msra.mxu0 0.0
  %349 = vmatprep.subr.mxu0 0.0
  %350 = vmatpush2.msra.mxu0 0.0
  %351 = vmatprep.subr.mxu0 0.0
  %352 = vmatpush2.msra.mxu0 0.0
  %353 = vmatprep.subr.mxu0 0.0
  %354 = vmatpush2.msra.mxu0 0.0
  %355 = vmatprep.subr.mxu0 0.0
  %356 = vmatpush2.msra.mxu0 0.0
  %357 = vmatprep.subr.mxu0 0.0
  %358 = vmatpush2.msra.mxu0 0.0
  %359 = vmatprep.subr.mxu0 0.0
  %360 = vmatpush2.msra.mxu0 0.0
  %361 = vmatprep.subr.mxu0 0.0
  %362 = vmatpush2.msra.mxu0 0.0
  %363 = vmatprep.subr.mxu0 0.0
  %364 = vmatpush2.msra.mxu0 0.0
  %365 = vmatprep.subr.mxu0 0.0
  %366 = vmatpush2.msra.mxu0 0.0
  %367 = vmatprep.subr.mxu0 0.0
  %368 = vmatpush2.msra.mxu0 0.0
  %369 = vmatprep.subr.mxu0 0.0
  %370 = vmatpush2.msra.mxu0 0.0
  %371 = vmatprep.subr.mxu0 0.0
  %372 = vmatpush2.msra.mxu0 0.0
  %373 = vmatprep.subr.mxu0 0.0
  %374 = vmatpush2.msra.mxu0 0.0
  %375 = vmatprep.subr.mxu0 0.0
  %376 = vmatpush2.msra.mxu0 0.0
  %377 = vmatprep.subr.mxu0 0.0
  %378 = vmatpush2.msra.mxu0 0.0
  %379 = vmatprep.mubr.f32.mxu0 0.0
  %380 = vmatmul.mubr.f32.gmra.mxu0 %v310
  %v381 = vpop.f32.mrf.mxu0
  %v382 = vadd.f32 0.0, %v381
  %v383 = vpop.f32.mrf.mxu0
  %384 = vmatprep.mubr.f32.mxu0 0.0
  %385 = vmatmul.mubr.f32.gmra.mxu0 %v313
  %v386 = vpop.f32.mrf.mxu0
  %v387 = vadd.f32 0.0, %v386
  %v388 = vpop.f32.mrf.mxu0
  %389 = vdwg.mxu0
  %v390 = vmul.f32 %v305, %v382
  %v391 = vmul.f32 %v306, %v387
  %vm392 = vcmask 130048
  %v394 = vsel %vm392, %v73, 0
  %396 = vmatprep.subr.mxu0 0.0
  %397 = vmatpush1.msra.mxu0 0.0
  %398 = vmatprep.subr.mxu0 0.0
  %399 = vmatpush1.msra.mxu0 0.0
  %400 = vmatprep.subr.mxu0 0.0
  %401 = vmatpush1.msra.mxu0 0.0
  %402 = vmatprep.subr.mxu0 0.0
  %403 = vmatpush1.msra.mxu0 0.0
  %404 = vmatprep.subr.mxu0 0.0
  %405 = vmatpush1.msra.mxu0 0.0
  %406 = vmatprep.subr.mxu0 0.0
  %407 = vmatpush1.msra.mxu0 0.0
  %408 = vmatprep.subr.mxu0 0.0
  %409 = vmatpush1.msra.mxu0 0.0
  %410 = vmatprep.subr.mxu0 0.0
  %411 = vmatpush1.msra.mxu0 0.0
  %412 = vmatprep.subr.mxu0 0.0
  %413 = vmatpush1.msra.mxu0 0.0
  %414 = vmatprep.subr.mxu0 0.0
  %415 = vmatpush1.msra.mxu0 0.0
  %416 = vmatprep.subr.mxu0 0.0
  %417 = vmatpush1.msra.mxu0 0.0
  %418 = vmatprep.subr.mxu0 0.0
  %419 = vmatpush1.msra.mxu0 0.0
  %420 = vmatprep.subr.mxu0 0.0
  %421 = vmatpush1.msra.mxu0 0.0
  %422 = vmatprep.subr.mxu0 0.0
  %423 = vmatpush1.msra.mxu0 0.0
  %424 = vmatprep.subr.mxu0 0.0
  %425 = vmatpush1.msra.mxu0 %v391
  %426 = vmatprep.subr.mxu0 0.0
  %427 = vmatpush1.msra.mxu0 %v390
  %428 = vmatprep.subr.mxu0 0.0
  %429 = vmatpush2.msra.mxu0 0.0
  %430 = vmatprep.subr.mxu0 0.0
  %431 = vmatpush2.msra.mxu0 0.0
  %432 = vmatprep.subr.mxu0 0.0
  %433 = vmatpush2.msra.mxu0 0.0
  %434 = vmatprep.subr.mxu0 0.0
  %435 = vmatpush2.msra.mxu0 0.0
  %436 = vmatprep.subr.mxu0 0.0
  %437 = vmatpush2.msra.mxu0 0.0
  %438 = vmatprep.subr.mxu0 0.0
  %439 = vmatpush2.msra.mxu0 0.0
  %440 = vmatprep.subr.mxu0 0.0
  %441 = vmatpush2.msra.mxu0 0.0
  %442 = vmatprep.subr.mxu0 0.0
  %443 = vmatpush2.msra.mxu0 0.0
  %444 = vmatprep.subr.mxu0 0.0
  %445 = vmatpush2.msra.mxu0 0.0
  %446 = vmatprep.subr.mxu0 0.0
  %447 = vmatpush2.msra.mxu0 0.0
  %448 = vmatprep.subr.mxu0 0.0
  %449 = vmatpush2.msra.mxu0 0.0
  %450 = vmatprep.subr.mxu0 0.0
  %451 = vmatpush2.msra.mxu0 0.0
  %452 = vmatprep.subr.mxu0 0.0
  %453 = vmatpush2.msra.mxu0 0.0
  %454 = vmatprep.subr.mxu0 0.0
  %455 = vmatpush2.msra.mxu0 0.0
  %456 = vmatprep.subr.mxu0 0.0
  %457 = vmatpush2.msra.mxu0 0.0
  %458 = vmatprep.subr.mxu0 0.0
  %459 = vmatpush2.msra.mxu0 0.0
  %460 = vmatprep.mubr.f32.mxu0 0.0
  %461 = vmatmul.mubr.f32.gmra.mxu0 %v394
  %v462 = vpop.f32.mrf.mxu0
  %v463 = vadd.f32 0.0, %v462
  %v464 = vpop.f32.mrf.mxu0
  %465 = vdwg.mxu0
  %v466 = vmul.f32 %v300, %v463
  %467 = vmatprep.subr.mxu0 0.0
  %468 = vmatpush1.msra.mxu0 0.0
  %469 = vmatprep.subr.mxu0 0.0
  %470 = vmatpush1.msra.mxu0 0.0
  %471 = vmatprep.subr.mxu0 0.0
  %472 = vmatpush1.msra.mxu0 0.0
  %473 = vmatprep.subr.mxu0 0.0
  %474 = vmatpush1.msra.mxu0 0.0
  %475 = vmatprep.subr.mxu0 0.0
  %476 = vmatpush1.msra.mxu0 0.0
  %477 = vmatprep.subr.mxu0 0.0
  %478 = vmatpush1.msra.mxu0 0.0
  %479 = vmatprep.subr.mxu0 0.0
  %480 = vmatpush1.msra.mxu0 0.0
  %481 = vmatprep.subr.mxu0 0.0
  %482 = vmatpush1.msra.mxu0 0.0
  %483 = vmatprep.subr.mxu0 0.0
  %484 = vmatpush1.msra.mxu0 0.0
  %485 = vmatprep.subr.mxu0 0.0
  %486 = vmatpush1.msra.mxu0 0.0
  %487 = vmatprep.subr.mxu0 0.0
  %488 = vmatpush1.msra.mxu0 0.0
  %489 = vmatprep.subr.mxu0 0.0
  %490 = vmatpush1.msra.mxu0 0.0
  %491 = vmatprep.subr.mxu0 0.0
  %492 = vmatpush1.msra.mxu0 0.0
  %493 = vmatprep.subr.mxu0 0.0
  %494 = vmatpush1.msra.mxu0 0.0
  %495 = vmatprep.subr.mxu0 0.0
  %496 = vmatpush1.msra.mxu0 0.0
  %497 = vmatprep.subr.mxu0 0.0
  %498 = vmatpush1.msra.mxu0 %v47
  %499 = vmatprep.subr.mxu0 0.0
  %500 = vmatpush2.msra.mxu0 0.0
  %501 = vmatprep.subr.mxu0 0.0
  %502 = vmatpush2.msra.mxu0 0.0
  %503 = vmatprep.subr.mxu0 0.0
  %504 = vmatpush2.msra.mxu0 0.0
  %505 = vmatprep.subr.mxu0 0.0
  %506 = vmatpush2.msra.mxu0 0.0
  %507 = vmatprep.subr.mxu0 0.0
  %508 = vmatpush2.msra.mxu0 0.0
  %509 = vmatprep.subr.mxu0 0.0
  %510 = vmatpush2.msra.mxu0 0.0
  %511 = vmatprep.subr.mxu0 0.0
  %512 = vmatpush2.msra.mxu0 0.0
  %513 = vmatprep.subr.mxu0 0.0
  %514 = vmatpush2.msra.mxu0 0.0
  %515 = vmatprep.subr.mxu0 0.0
  %516 = vmatpush2.msra.mxu0 0.0
  %517 = vmatprep.subr.mxu0 0.0
  %518 = vmatpush2.msra.mxu0 0.0
  %519 = vmatprep.subr.mxu0 0.0
  %520 = vmatpush2.msra.mxu0 0.0
  %521 = vmatprep.subr.mxu0 0.0
  %522 = vmatpush2.msra.mxu0 0.0
  %523 = vmatprep.subr.mxu0 0.0
  %524 = vmatpush2.msra.mxu0 0.0
  %525 = vmatprep.subr.mxu0 0.0
  %526 = vmatpush2.msra.mxu0 0.0
  %527 = vmatprep.subr.mxu0 0.0
  %528 = vmatpush2.msra.mxu0 0.0
  %529 = vmatprep.subr.mxu0 0.0
  %530 = vmatpush2.msra.mxu0 0.0
  %531 = vmatprep.mubr.f32.mxu0 0.0
  %532 = vmatmul.mubr.f32.gmra.mxu0 %v101
  %v533 = vpop.f32.mrf.mxu0
  %v534 = vadd.f32 0.0, %v533
  %v535 = vpop.f32.mrf.mxu0
  %536 = vmatprep.mubr.f32.mxu0 0.0
  %537 = vmatmul.mubr.f32.gmra.mxu0 %v104
  %v538 = vpop.f32.mrf.mxu0
  %v539 = vadd.f32 0.0, %v538
  %v540 = vpop.f32.mrf.mxu0
  %541 = vdwg.mxu0
  %v542 = vmul.f32 %v305, %v534
  %v543 = vmul.f32 %v306, %v539
  %v545 = vsel %vm392, %v70, 0
  %547 = vmatprep.subr.mxu0 0.0
  %548 = vmatpush1.msra.mxu0 0.0
  %549 = vmatprep.subr.mxu0 0.0
  %550 = vmatpush1.msra.mxu0 0.0
  %551 = vmatprep.subr.mxu0 0.0
  %552 = vmatpush1.msra.mxu0 0.0
  %553 = vmatprep.subr.mxu0 0.0
  %554 = vmatpush1.msra.mxu0 0.0
  %555 = vmatprep.subr.mxu0 0.0
  %556 = vmatpush1.msra.mxu0 0.0
  %557 = vmatprep.subr.mxu0 0.0
  %558 = vmatpush1.msra.mxu0 0.0
  %559 = vmatprep.subr.mxu0 0.0
  %560 = vmatpush1.msra.mxu0 0.0
  %561 = vmatprep.subr.mxu0 0.0
  %562 = vmatpush1.msra.mxu0 0.0
  %563 = vmatprep.subr.mxu0 0.0
  %564 = vmatpush1.msra.mxu0 0.0
  %565 = vmatprep.subr.mxu0 0.0
  %566 = vmatpush1.msra.mxu0 0.0
  %567 = vmatprep.subr.mxu0 0.0
  %568 = vmatpush1.msra.mxu0 0.0
  %569 = vmatprep.subr.mxu0 0.0
  %570 = vmatpush1.msra.mxu0 0.0
  %571 = vmatprep.subr.mxu0 0.0
  %572 = vmatpush1.msra.mxu0 0.0
  %573 = vmatprep.subr.mxu0 0.0
  %574 = vmatpush1.msra.mxu0 0.0
  %575 = vmatprep.subr.mxu0 0.0
  %576 = vmatpush1.msra.mxu0 %v543
  %577 = vmatprep.subr.mxu0 0.0
  %578 = vmatpush1.msra.mxu0 %v542
  %579 = vmatprep.subr.mxu0 0.0
  %580 = vmatpush2.msra.mxu0 0.0
  %581 = vmatprep.subr.mxu0 0.0
  %582 = vmatpush2.msra.mxu0 0.0
  %583 = vmatprep.subr.mxu0 0.0
  %584 = vmatpush2.msra.mxu0 0.0
  %585 = vmatprep.subr.mxu0 0.0
  %586 = vmatpush2.msra.mxu0 0.0
  %587 = vmatprep.subr.mxu0 0.0
  %588 = vmatpush2.msra.mxu0 0.0
  %589 = vmatprep.subr.mxu0 0.0
  %590 = vmatpush2.msra.mxu0 0.0
  %591 = vmatprep.subr.mxu0 0.0
  %592 = vmatpush2.msra.mxu0 0.0
  %593 = vmatprep.subr.mxu0 0.0
  %594 = vmatpush2.msra.mxu0 0.0
  %595 = vmatprep.subr.mxu0 0.0
  %596 = vmatpush2.msra.mxu0 0.0
  %597 = vmatprep.subr.mxu0 0.0
  %598 = vmatpush2.msra.mxu0 0.0
  %599 = vmatprep.subr.mxu0 0.0
  %600 = vmatpush2.msra.mxu0 0.0
  %601 = vmatprep.subr.mxu0 0.0
  %602 = vmatpush2.msra.mxu0 0.0
  %603 = vmatprep.subr.mxu0 0.0
  %604 = vmatpush2.msra.mxu0 0.0
  %605 = vmatprep.subr.mxu0 0.0
  %606 = vmatpush2.msra.mxu0 0.0
  %607 = vmatprep.subr.mxu0 0.0
  %608 = vmatpush2.msra.mxu0 0.0
  %609 = vmatprep.subr.mxu0 0.0
  %610 = vmatpush2.msra.mxu0 0.0
  %611 = vmatprep.mubr.f32.mxu0 0.0
  %612 = vmatmul.mubr.f32.gmra.mxu0 %v545
  %v613 = vpop.f32.mrf.mxu0
  %v614 = vadd.f32 0.0, %v613
  %v615 = vpop.f32.mrf.mxu0
  %616 = vdwg.mxu0
  %v617 = vmul.f32 %v47, %v300
  %v618 = vmul.f32 %v617, %v302
  %v619 = vmul.f32 %v618, %v614
  %v620 = vmul.f32 %v619, 2.0
  %v621 = vadd.f32 %v466, %v620
  %v622 = vadd.f32 %v621, %v290
  %623 = vst.msk [vmem:[%s8 + $0x8] sm:$0xff] %vm62, %v622
  // Predicated region
  $region34: #{tpu_custom_call.1} parent=0 // pred_check
    _
  $region35: #{tpu_custom_call.1} parent=0 // pred_check_branch
    %625 = sbr.rel (0) target = $region37
  $region36: #{tpu_custom_call.1} parent=0 // pred_region
    _
  $region37: #{tpu_custom_call.1} parent=0 // pred_fallthru
    _
  // Predicated region
  $region38: #{tpu_custom_call.1} parent=0 // pred_check
    _
  $region39: #{tpu_custom_call.1} parent=0 // pred_check_branch
    %627 = sbr.rel (0) target = $region41
  $region40: #{tpu_custom_call.1} parent=0 // pred_region
    _
  $region41: #{tpu_custom_call.1} parent=0 // pred_fallthru
    _

</llo_original>
